<compile_context>
chip_gen: v5e
topology: v5e:2x2
jax: 0.10.0
libtpu: 0.0.40
codegen_flags: <defaults>
</compile_context>

<pallas_src>
import functools

import jax
import jax.numpy as jnp
from jax.experimental import pallas as pl
from jax.experimental.pallas import tpu as pltpu


# ----------------------------------------------------------------------------
# Pallas kernel: global-avg-pool + 1x1 conv (BN folded) + ReLU, fully fused.
# ----------------------------------------------------------------------------

def _image_pool_kernel(x_ref, w_ref, b_ref, o_ref, acc_ref, *, inv_hw):
    """Grid = (H*W tiles,).  x_ref:(B,Cin,thw) f32, w_ref:(Cin,Cout) bf16,
    b_ref:(1,Cout) f32, o_ref:(B,Cout) f32, acc_ref:(B,Cin) f32 scratch."""
    k = pl.program_id(0)

    @pl.when(k == 0)
    def _init():
        acc_ref[...] = jnp.zeros_like(acc_ref)

    # Partial global-average-pool: sum this H*W tile (zero padding is inert).
    acc_ref[...] += jnp.sum(x_ref[...], axis=-1)            # (B, Cin) f32

    @pl.when(k == pl.num_programs(0) - 1)
    def _finalize():
        # Feed the MXU bf16 operands, accumulate in f32 (feedback item #1).
        xm = (acc_ref[...] * inv_hw).astype(jnp.bfloat16)    # (B, Cin)
        y = jnp.dot(xm, w_ref[...], preferred_element_type=jnp.float32)
        y = jnp.maximum(y + b_ref[...], 0.0)                 # folded BN + ReLU
        o_ref[...] = y


def _round_up(v, m):
    return (v + m - 1) // m * m


def _choose_hw_tile(b, c, hw, *, bytes_per_elem=4, budget_bytes=4 * 1024 * 1024):
    """Use the full H*W extent as one block if it fits comfortably (no padding,
    fewest grid steps); otherwise tile H*W in multiples of 128 lanes."""
    if b * c * hw * bytes_per_elem <= budget_bytes:
        return hw, hw
    thw = max(128, (budget_bytes // (b * c * bytes_per_elem)) // 128 * 128)
    return thw, _round_up(hw, thw)


def image_pool_forward(params, x):
    """x: (B, Cin, H, W) float32  ->  (B, Cout, H, W) float32."""
    w = params["w_packed"]                 # (Cin, Cout) bfloat16, BN folded
    bias = params["bias"]                  # (1, Cout) float32
    B, Cin, H, W = x.shape
    Cout = w.shape[1]
    HW = H * W

    # Free reshape: NCHW is contiguous over (H, W), no relayout emitted.
    x3 = x.reshape(B, Cin, HW)

    thw, hw_pad = _choose_hw_tile(B, Cin, HW)
    if hw_pad != HW:
        # Zero padding is inert for the sum; the mean uses the true H*W.
        x3 = jnp.pad(x3, ((0, 0), (0, 0), (0, hw_pad - HW)))
    n_steps = hw_pad // thw

    cost = pl.CostEstimate(
        flops=2 * B * Cin * Cout + B * Cin * HW,
        transcendentals=0,
        bytes_accessed=x3.size * 4 + w.size * 2 + bias.size * 4 + B * Cout * 4,
    )

    y = pl.pallas_call(
        functools.partial(_image_pool_kernel, inv_hw=1.0 / HW),
        out_shape=jax.ShapeDtypeStruct((B, Cout), jnp.float32),
        grid_spec=pltpu.PrefetchScalarGridSpec(
            num_scalar_prefetch=0,
            grid=(n_steps,),
            in_specs=[
                pl.BlockSpec((B, Cin, thw), lambda k: (0, 0, k)),
                pl.BlockSpec((Cin, Cout), lambda k: (0, 0)),
                pl.BlockSpec((1, Cout), lambda k: (0, 0)),
            ],
            out_specs=pl.BlockSpec((B, Cout), lambda k: (0, 0)),
            scratch_shapes=[pltpu.VMEM((B, Cin), jnp.float32)],
        ),
        compiler_params=pltpu.CompilerParams(
            dimension_semantics=("arbitrary",),          # H*W axis is a reduction
            vmem_limit_bytes=32 * 1024 * 1024,           # explicit, safe on v5e/v6e/v7x
        ),
        cost_estimate=cost,
    )(x3, w, bias)

    # F.interpolate(mode='bilinear', align_corners=False) from a 1x1 source is
    # a constant in every output pixel -> spatial broadcast.
    return jnp.broadcast_to(y[:, :, None, None], (B, Cout, H, W))


# ----------------------------------------------------------------------------
# Parameter construction: weights pre-transposed, BN folded, bf16-packed once.
# ----------------------------------------------------------------------------

def build_image_pool_params(in_ch, out_ch, key):
    """_ImagePool = AdaptiveAvgPool2d(1) + _ConvBnReLU(in_ch, out_ch, 1,1,0,1)."""
    kw, kg, kb = jax.random.split(key, 3)
    std = (2.0 / in_ch) ** 0.5
    w = std * jax.random.normal(kw, (out_ch, in_ch, 1, 1), jnp.float32)  # bias=False
    gamma = 1.0 + 0.1 * jax.random.normal(kg, (out_ch,), jnp.float32)
    beta = 0.1 * jax.random.normal(kb, (out_ch,), jnp.float32)
    eps = 1e-5
    scale = gamma / jnp.sqrt(1.0 + eps)          # eval-mode BN: mean=0, var=1
    # Fold BN scale into the weight columns; pre-transpose to (Cin, Cout).
    w_mat = w[:, :, 0, 0].T * scale[None, :]
    return dict(
        w_packed=w_mat.astype(jnp.bfloat16),     # MXU operand, packed once
        bias=beta.reshape(1, out_ch).astype(jnp.float32),
    )


# ----------------------------------------------------------------------------
# Demo / self-check
# ----------------------------------------------------------------------------

if __name__ == "__main__":
    B, Cin, Cout, H, W = 2, 64, 32, 16, 16
    key = jax.random.PRNGKey(0)
    kx, kp = jax.random.split(key)
    x = jax.random.normal(kx, (B, Cin, H, W), jnp.float32)
    params = build_image_pool_params(Cin, Cout, kp)

    out = jax.jit(image_pool_forward)(params, x)
    out = jax.block_until_ready(out)
    assert out.shape == (B, Cout, H, W), out.shape
    assert bool(jnp.all(jnp.isfinite(out)))

    # Pure-JAX reference using the same bf16-folded weight (only the bf16
    # rounding of the pooled activation / reduce order differ).
    xm = jnp.mean(x, axis=(2, 3))
    y_ref = jnp.maximum(
        xm.astype(jnp.bfloat16).astype(jnp.float32)
        @ params["w_packed"].astype(jnp.float32) + params["bias"], 0.0)
    ref = jnp.broadcast_to(y_ref[:, :, None, None], (B, Cout, H, W))
    max_err = float(jnp.max(jnp.abs(out - ref)))
    assert max_err < 2e-3, max_err

    print("KERNEL_OK")
</pallas_src>

<mosaic_0001>
module attributes {stable_mosaic.version = 11 : i64} {
  func.func @_image_pool_kernel(%arg0: i32, %arg1: memref<2x64x256xf32, #tpu.memory_space<vmem>>, %arg2: memref<64x32xbf16, #tpu.memory_space<vmem>>, %arg3: memref<1x32xf32, #tpu.memory_space<vmem>>, %arg4: memref<2x32xf32, #tpu.memory_space<vmem>>, %arg5: memref<2x64xf32, #tpu.memory_space<vmem>>) attributes {dimension_semantics = [#tpu.dimension_semantics<arbitrary>], iteration_bounds = array<i64: 1>, scalar_prefetch = 0 : i64, scratch_operands = 1 : i64, tpu.core_type = #tpu.core_type<tc>, window_params = [{transform_indices = @transform_0, window_bounds = array<i64: 2, 64, 256>}, {pipeline_mode = #tpu.pipeline_mode<synchronous>, transform_indices = @transform_1, window_bounds = array<i64: 64, 32>}, {pipeline_mode = #tpu.pipeline_mode<synchronous>, transform_indices = @transform_2, window_bounds = array<i64: 1, 32>}, {pipeline_mode = #tpu.pipeline_mode<synchronous>, transform_indices = @transform_3, window_bounds = array<i64: 2, 32>}]} {
    %c0_i32 = arith.constant 0 : i32
    %0 = arith.cmpi eq, %arg0, %c0_i32 : i32
    %1 = arith.extui %0 : i1 to i32
    %c0_i32_0 = arith.constant 0 : i32
    %2 = arith.cmpi ne, %1, %c0_i32_0 : i32
    scf.if %2 {
      %cst_9 = arith.constant 0.000000e+00 : f32
      %11 = vector.broadcast %cst_9 : f32 to vector<2x64xf32>
      %c0_10 = arith.constant 0 : index
      %c0_11 = arith.constant 0 : index
      %12 = vector.load %arg5[%c0_10, %c0_11] : memref<2x64xf32, #tpu.memory_space<vmem>>, vector<2x64xf32>
      tpu.vector_store %arg5[%c0_10, %c0_11], %11 {strides = array<i32>} : memref<2x64xf32, #tpu.memory_space<vmem>>, vector<2x64xf32>,
    } else {
    }
    %c0 = arith.constant 0 : index
    %c0_1 = arith.constant 0 : index
    %3 = vector.load %arg5[%c0, %c0_1] : memref<2x64xf32, #tpu.memory_space<vmem>>, vector<2x64xf32>
    %c0_2 = arith.constant 0 : index
    %c0_3 = arith.constant 0 : index
    %c0_4 = arith.constant 0 : index
    %4 = vector.load %arg1[%c0_2, %c0_3, %c0_4] : memref<2x64x256xf32, #tpu.memory_space<vmem>>, vector<2x64x256xf32>
    %cst = arith.constant dense<0.000000e+00> : vector<2x64xf32>
    %5 = vector.multi_reduction <add>, %4, %cst [2] : vector<2x64x256xf32> to vector<2x64xf32>
    %6 = arith.addf %3, %5 : vector<2x64xf32>
    %c0_5 = arith.constant 0 : index
    %c0_6 = arith.constant 0 : index
    %7 = vector.load %arg5[%c0_5, %c0_6] : memref<2x64xf32, #tpu.memory_space<vmem>>, vector<2x64xf32>
    tpu.vector_store %arg5[%c0_5, %c0_6], %6 {strides = array<i32>} : memref<2x64xf32, #tpu.memory_space<vmem>>, vector<2x64xf32>,
    %c0_i32_7 = arith.constant 0 : i32
    %8 = arith.cmpi eq, %arg0, %c0_i32_7 : i32
    %9 = arith.extui %8 : i1 to i32
    %c0_i32_8 = arith.constant 0 : i32
    %10 = arith.cmpi ne, %9, %c0_i32_8 : i32
    scf.if %10 {
      %c0_9 = arith.constant 0 : index
      %c0_10 = arith.constant 0 : index
      %11 = vector.load %arg5[%c0_9, %c0_10] : memref<2x64xf32, #tpu.memory_space<vmem>>, vector<2x64xf32>
      %cst_11 = arith.constant 3.906250e-03 : f32
      %12 = vector.broadcast %cst_11 : f32 to vector<2x64xf32>
      %13 = arith.mulf %11, %12 : vector<2x64xf32>
      %14 = arith.truncf %13 : vector<2x64xf32> to vector<2x64xbf16>
      %c0_12 = arith.constant 0 : index
      %c0_13 = arith.constant 0 : index
      %15 = vector.load %arg2[%c0_12, %c0_13] : memref<64x32xbf16, #tpu.memory_space<vmem>>, vector<64x32xbf16>
      %cst_14 = arith.constant dense<0.000000e+00> : vector<2x32xf32>
      %16 = tpu.matmul %14, %15, %cst_14 {dimension_numbers = #tpu.dot_dimension_numbers<[1], [0], [0], [1], [0, 0, 1, 1], [], []>} : vector<2x64xbf16>, vector<64x32xbf16>, vector<2x32xf32> -> vector<2x32xf32>
      %c0_15 = arith.constant 0 : index
      %c0_16 = arith.constant 0 : index
      %17 = vector.load %arg3[%c0_15, %c0_16] : memref<1x32xf32, #tpu.memory_space<vmem>>, vector<1x32xf32>
      %18 = vector.broadcast %17 : vector<1x32xf32> to vector<2x32xf32>
      %19 = arith.addf %16, %18 : vector<2x32xf32>
      %cst_17 = arith.constant 0.000000e+00 : f32
      %20 = vector.broadcast %cst_17 : f32 to vector<2x32xf32>
      %21 = arith.maximumf %19, %20 : vector<2x32xf32>
      %c0_18 = arith.constant 0 : index
      %c0_19 = arith.constant 0 : index
      %22 = vector.load %arg4[%c0_18, %c0_19] : memref<2x32xf32, #tpu.memory_space<vmem>>, vector<2x32xf32>
      tpu.vector_store %arg4[%c0_18, %c0_19], %21 {strides = array<i32>} : memref<2x32xf32, #tpu.memory_space<vmem>>, vector<2x32xf32>,
    } else {
    }
    return
  }
  func.func @transform_0(%arg0: i32) -> (i32, i32, i32) {
    %c0_i32 = arith.constant 0 : i32
    %c0_i32_0 = arith.constant 0 : i32
    %c0_i32_1 = arith.constant 0 : i32
    return %c0_i32, %c0_i32_0, %arg0 : i32, i32, i32
  }
  func.func @transform_1(%arg0: i32) -> (i32, i32) {
    %c0_i32 = arith.constant 0 : i32
    %c0_i32_0 = arith.constant 0 : i32
    %c0_i32_1 = arith.constant 0 : i32
    return %c0_i32, %c0_i32_0 : i32, i32
  }
  func.func @transform_2(%arg0: i32) -> (i32, i32) {
    %c0_i32 = arith.constant 0 : i32
    %c0_i32_0 = arith.constant 0 : i32
    %c0_i32_1 = arith.constant 0 : i32
    return %c0_i32, %c0_i32_0 : i32, i32
  }
  func.func @transform_3(%arg0: i32) -> (i32, i32) {
    %c0_i32 = arith.constant 0 : i32
    %c0_i32_0 = arith.constant 0 : i32
    %c0_i32_1 = arith.constant 0 : i32
    return %c0_i32, %c0_i32_0 : i32, i32
  }
}

</mosaic_0001>

<llo_original>
// kernel: image_pool_forward.1
$region0: #{image_pool_forward.1}
  #allocation0 [shape = 'u32[]', space=smem, size = 0x4, offset = 0x4, fixed_abs, tag = 'smem constant byte address 0x4 - core index']
  #allocation1 [shape = 'u32[72,128]{1,0:T(1,128)}', space=vmem, size = 0x9000, scoped, tag = 'internal scratch']
  #allocation2 [shape = 'f32[2,64]{1,0:T(2,128)}', space=vmem, size = 0x400, scoped, tag = 'scratch operand']
  %s0 = inlined_call_operand.vmem [shape: f32[2,64,256], index: 0, kind: input, shape index: {}]
  %s1 = inlined_call_operand.vmem [shape: bf16[64,32], index: 1, kind: input, shape index: {}]
  %s2 = inlined_call_operand.vmem [shape: f32[1,32], index: 2, kind: input, shape index: {}]
  %s3 = inlined_call_operand.vmem [shape: f32[2,32], index: 3, kind: output, shape index: {}]
  %s4 = sld [smem:[#allocation0]]
  $region30: #{image_pool_forward.1} parent=0
    _
  %s6 = ssub.s32 1, %s4
  %s7 = scalar_select 0, %s6, %s4
  // Predicated region
  $region2: #{image_pool_forward.1} parent=0 // pred_check
    _
  $region3: #{image_pool_forward.1} parent=0 // pred_check_branch
    %9 = sbr.rel (0) target = $region5
  $region4: #{image_pool_forward.1} parent=0 // pred_region
    _
  $region5: #{image_pool_forward.1} parent=0 // pred_fallthru
    _
  // Predicated region
  $region6: #{image_pool_forward.1} parent=0 // pred_check
    _
  $region7: #{image_pool_forward.1} parent=0 // pred_check_branch
    %11 = sbr.rel (0) target = $region9
  $region8: #{image_pool_forward.1} parent=0 // pred_region
    _
  $region9: #{image_pool_forward.1} parent=0 // pred_fallthru
    _
  // Predicated region
  $region10: #{image_pool_forward.1} parent=0 // pred_check
    _
  $region11: #{image_pool_forward.1} parent=0 // pred_check_branch
    %13 = sbr.rel (0) target = $region13
  $region12: #{image_pool_forward.1} parent=0 // pred_region
    _
  $region13: #{image_pool_forward.1} parent=0 // pred_fallthru
    _
  %p15 = scmp.eq.s32.totalorder 0, 0
  // Predicated region
  $region14: #{image_pool_forward.1} parent=0 // pred_check
    %p16 = pneg %p15
  $region15: #{image_pool_forward.1} parent=0 // pred_check_branch
    %18 = sbr.rel (%p16) target = $region17
  $region16: #{image_pool_forward.1} parent=0 // pred_region
    %vm19 = vcmask 517120
    %20 = vst.msk [vmem:[#allocation2] sm:$0x3] %vm19, 0.0
  $region17: #{image_pool_forward.1} parent=0 // pred_fallthru
    _
  %v21 = vld [vmem:[#allocation2] sm:$0x3]
  %v22 = vld [vmem:[%s0] sm:$0xff]
  %v23 = vld [vmem:[%s0 + $0x8] sm:$0xff]
  %v24 = vld [vmem:[%s0 + $0x10] sm:$0xff]
  %v25 = vld [vmem:[%s0 + $0x18] sm:$0xff]
  %v26 = vld [vmem:[%s0 + $0x20] sm:$0xff]
  %v27 = vld [vmem:[%s0 + $0x28] sm:$0xff]
  %v28 = vld [vmem:[%s0 + $0x30] sm:$0xff]
  %v29 = vld [vmem:[%s0 + $0x38] sm:$0xff]
  %v30 = vld [vmem:[%s0 + $0x40] sm:$0xff]
  %v31 = vld [vmem:[%s0 + $0x48] sm:$0xff]
  %v32 = vld [vmem:[%s0 + $0x50] sm:$0xff]
  %v33 = vld [vmem:[%s0 + $0x58] sm:$0xff]
  %v34 = vld [vmem:[%s0 + $0x60] sm:$0xff]
  %v35 = vld [vmem:[%s0 + $0x68] sm:$0xff]
  %v36 = vld [vmem:[%s0 + $0x70] sm:$0xff]
  %v37 = vld [vmem:[%s0 + $0x78] sm:$0xff]
  %v38 = vld [vmem:[%s0 + $0x80] sm:$0xff]
  %v39 = vld [vmem:[%s0 + $0x88] sm:$0xff]
  %v40 = vld [vmem:[%s0 + $0x90] sm:$0xff]
  %v41 = vld [vmem:[%s0 + $0x98] sm:$0xff]
  %v42 = vld [vmem:[%s0 + $0xa0] sm:$0xff]
  %v43 = vld [vmem:[%s0 + $0xa8] sm:$0xff]
  %v44 = vld [vmem:[%s0 + $0xb0] sm:$0xff]
  %v45 = vld [vmem:[%s0 + $0xb8] sm:$0xff]
  %v46 = vld [vmem:[%s0 + $0xc0] sm:$0xff]
  %v47 = vld [vmem:[%s0 + $0xc8] sm:$0xff]
  %v48 = vld [vmem:[%s0 + $0xd0] sm:$0xff]
  %v49 = vld [vmem:[%s0 + $0xd8] sm:$0xff]
  %v50 = vld [vmem:[%s0 + $0xe0] sm:$0xff]
  %v51 = vld [vmem:[%s0 + $0xe8] sm:$0xff]
  %v52 = vld [vmem:[%s0 + $0xf0] sm:$0xff]
  %v53 = vld [vmem:[%s0 + $0xf8] sm:$0xff]
  %v54 = vadd.f32 %v22, %v23
  %55 = vadd.xlane.f32.xlu0 %v54
  %v56 = vpop.xlane.xlu0 %55
  %v57 = vadd.f32 %v24, %v25
  %58 = vadd.xlane.f32.xlu0 %v57
  %v59 = vpop.xlane.xlu0 %58
  %v60 = vadd.f32 %v26, %v27
  %61 = vadd.xlane.f32.xlu0 %v60
  %v62 = vpop.xlane.xlu0 %61
  %v63 = vadd.f32 %v28, %v29
  %64 = vadd.xlane.f32.xlu0 %v63
  %v65 = vpop.xlane.xlu0 %64
  %v66 = vadd.f32 %v30, %v31
  %67 = vadd.xlane.f32.xlu0 %v66
  %v68 = vpop.xlane.xlu0 %67
  %v69 = vadd.f32 %v32, %v33
  %70 = vadd.xlane.f32.xlu0 %v69
  %v71 = vpop.xlane.xlu0 %70
  %v72 = vadd.f32 %v34, %v35
  %73 = vadd.xlane.f32.xlu0 %v72
  %v74 = vpop.xlane.xlu0 %73
  %v75 = vadd.f32 %v36, %v37
  %76 = vadd.xlane.f32.xlu0 %v75
  %v77 = vpop.xlane.xlu0 %76
  %v78 = vadd.f32 %v38, %v39
  %79 = vadd.xlane.f32.xlu0 %v78
  %v80 = vpop.xlane.xlu0 %79
  %v81 = vadd.f32 %v40, %v41
  %82 = vadd.xlane.f32.xlu0 %v81
  %v83 = vpop.xlane.xlu0 %82
  %v84 = vadd.f32 %v42, %v43
  %85 = vadd.xlane.f32.xlu0 %v84
  %v86 = vpop.xlane.xlu0 %85
  %v87 = vadd.f32 %v44, %v45
  %88 = vadd.xlane.f32.xlu0 %v87
  %v89 = vpop.xlane.xlu0 %88
  %v90 = vadd.f32 %v46, %v47
  %91 = vadd.xlane.f32.xlu0 %v90
  %v92 = vpop.xlane.xlu0 %91
  %v93 = vadd.f32 %v48, %v49
  %94 = vadd.xlane.f32.xlu0 %v93
  %v95 = vpop.xlane.xlu0 %94
  %v96 = vadd.f32 %v50, %v51
  %97 = vadd.xlane.f32.xlu0 %v96
  %v98 = vpop.xlane.xlu0 %97
  %v99 = vadd.f32 %v52, %v53
  %100 = vadd.xlane.f32.xlu0 %v99
  %v101 = vpop.xlane.xlu0 %100
  %v118 = vlaneseq
  %v119 = vand.u32 %v118, 127
  %v120 = vperm.slane %v56, %v119
  %v121 = vadd.s32 %v119, 4294967288
  %v122 = vperm.slane %v59, %v121
  %vm123 = vcmask 130112
  %v124 = vsel %vm123, %v122, %v120
  %v125 = vadd.s32 %v119, 4294967280
  %v126 = vperm.slane %v62, %v125
  %vm127 = vcmask 195712
  %v128 = vsel %vm127, %v126, %v124
  %v129 = vadd.s32 %v119, 4294967272
  %v130 = vperm.slane %v65, %v129
  %vm131 = vcmask 261312
  %v132 = vsel %vm131, %v130, %v128
  %v133 = vadd.s32 %v119, 4294967264
  %v134 = vperm.slane %v68, %v133
  %vm135 = vcmask 326912
  %v136 = vsel %vm135, %v134, %v132
  %v137 = vadd.s32 %v119, 4294967256
  %v138 = vperm.slane %v71, %v137
  %vm139 = vcmask 392512
  %v140 = vsel %vm139, %v138, %v136
  %v141 = vadd.s32 %v119, 4294967248
  %v142 = vperm.slane %v74, %v141
  %vm143 = vcmask 458112
  %v144 = vsel %vm143, %v142, %v140
  %v145 = vadd.s32 %v119, 4294967240
  %v146 = vperm.slane %v77, %v145
  %vm147 = vcmask 523712
  %v148 = vsel %vm147, %v146, %v144
  %v149 = vperm.slane %v80, %v119
  %v150 = vperm.slane %v83, %v121
  %v151 = vsel %vm123, %v150, %v149
  %v152 = vperm.slane %v86, %v125
  %v153 = vsel %vm127, %v152, %v151
  %v154 = vperm.slane %v89, %v129
  %v155 = vsel %vm131, %v154, %v153
  %v156 = vperm.slane %v92, %v133
  %v157 = vsel %vm135, %v156, %v155
  %v158 = vperm.slane %v95, %v137
  %v159 = vsel %vm139, %v158, %v157
  %v160 = vperm.slane %v98, %v141
  %v161 = vsel %vm143, %v160, %v159
  %v162 = vperm.slane %v101, %v145
  %v163 = vsel %vm147, %v162, %v161
  %vm164 = vcmask 1041409
  %v165 = vsel %vm164, %v163, %v148
  %v167 = vadd.f32 %v21, %v165
  %vm168 = vcmask 517120
  %169 = vst.msk [vmem:[#allocation2] sm:$0x3] %vm168, %v167
  // Predicated region
  $region18: #{image_pool_forward.1} parent=0 // pred_check
    %p170 = pneg %p15
  $region19: #{image_pool_forward.1} parent=0 // pred_check_branch
    %172 = sbr.rel (%p170) target = $region21
  $region20: #{image_pool_forward.1} parent=0 // pred_region
    %v173 = vld [vmem:[#allocation2] sm:$0x3]
    %v174 = vmul.f32 %v173, 0.00390625
    %v175 = vpack.c.bf16 %v174, %v174
    %v176 = vld [vmem:[%s1] sm:$0xf]
    %v177 = vld [vmem:[%s1 + $0x4] sm:$0xf]
    %v178 = vld [vmem:[%s1 + $0x8] sm:$0xf]
    %v179 = vld [vmem:[%s1 + $0xc] sm:$0xf]
    %v180 = vld [vmem:[%s1 + $0x10] sm:$0xf]
    %v181 = vld [vmem:[%s1 + $0x14] sm:$0xf]
    %v182 = vld [vmem:[%s1 + $0x18] sm:$0xf]
    %v183 = vld [vmem:[%s1 + $0x1c] sm:$0xf]
    %v184 = vld [vmem:[%s2] sm:$0x1]
    %v186 = vperm.slane %v184, 0
    %v196 = vunpack.c.l.b16 %v176
    %v197 = vunpack.c.l.b16 %v177
    %v198 = vunpack.c.l.b16 %v178
    %v199 = vunpack.c.l.b16 %v179
    %v200 = vunpack.c.l.b16 %v180
    %v201 = vunpack.c.l.b16 %v181
    %v202 = vunpack.c.l.b16 %v182
    %v203 = vunpack.c.l.b16 %v183
    %v204 = vpack.c.b16 %v197, %v196
    %v205 = vpack.c.b16 %v199, %v198
    %v206 = vpack.c.b16 %v201, %v200
    %v207 = vpack.c.b16 %v203, %v202
    %vm212 = vcmask 523264
    %v214 = vsel %vm212, %v175, 0
    %216 = vmatpush.bf16.msra.mxu0 0
    %217 = vmatpush.bf16.msra.mxu0 0
    %218 = vmatpush.bf16.msra.mxu0 0
    %219 = vmatpush.bf16.msra.mxu0 0
    %220 = vmatpush.bf16.msra.mxu0 %v207
    %221 = vmatpush.bf16.msra.mxu0 %v206
    %222 = vmatpush.bf16.msra.mxu0 %v205
    %223 = vmatpush.bf16.msra.mxu0 %v204
    %224 = vmatmul.bf16.gmra.mxu0 %v214
    %v225 = vpop.f32.mrf.mxu0
    %v226 = vadd.f32 %v186, %v225
    %v227 = vpop.f32.mrf.mxu0
    %228 = vdwg.mxu0
    %v229 = vmax.f32 %v226, 0.0
    %vm230 = vcmask 254976
    %231 = vst.msk [vmem:[%s3] sm:$0x3] %vm230, %v229
  $region21: #{image_pool_forward.1} parent=0 // pred_fallthru
    _
  // Predicated region
  $region22: #{image_pool_forward.1} parent=0 // pred_check
    _
  $region23: #{image_pool_forward.1} parent=0 // pred_check_branch
    %233 = sbr.rel (0) target = $region25
  $region24: #{image_pool_forward.1} parent=0 // pred_region
    _
  $region25: #{image_pool_forward.1} parent=0 // pred_fallthru
    _
  // Predicated region
  $region26: #{image_pool_forward.1} parent=0 // pred_check
    _
  $region27: #{image_pool_forward.1} parent=0 // pred_check_branch
    %235 = sbr.rel (0) target = $region29
  $region28: #{image_pool_forward.1} parent=0 // pred_region
    _
  $region29: #{image_pool_forward.1} parent=0 // pred_fallthru
    _

</llo_original>
